<compile_context>
chip_gen: v7x
topology: tpu7x:2x2x1
jax: 0.10.0
libtpu: 0.0.40
codegen_flags: <defaults>
</compile_context>

<pallas_src>
import functools

import jax
import jax.numpy as jnp
from jax import lax
from jax.experimental import pallas as pl
from jax.experimental.pallas import tpu as pltpu


def _nt_xent_kernel(z_ref, zp_ref, out_ref, *, n_valid, tm, tn, num_col_tiles,
                    pad_cols, inv_temp):
    # z_ref  : (NP, D) bf16, VMEM-resident L2-normalized embeddings.  Serves both as
    #          the key matrix and as the source of this grid step's query row tile.
    #          Pad rows (>= n_valid) are zero.
    # zp_ref : (TM, D) bf16 normalized positive-partner rows for this row tile
    #          (z with halves swapped, so row r pairs with row (r + B) mod N).
    # out_ref: (1, 1) f32 partial loss sum for this row tile.
    i = pl.program_id(0)
    r_align = tm if (tm & (tm - 1)) == 0 else 8
    c_align = tn if (tn & (tn - 1)) == 0 else 8
    row_start = pl.multiple_of(i * tm, r_align)

    q = z_ref[pl.ds(row_start, tm), :]                      # (TM, D) bf16 queries
    inv_t = jnp.float32(inv_temp)
    mask_val = jnp.float32(-1e30)                           # finite "-inf"

    # Positive term: cos(z_r, z_partner(r)) / temperature as a row-wise f32 dot.
    qf = q.astype(jnp.float32)
    pf = zp_ref[...].astype(jnp.float32)
    pos = inv_t * jnp.sum(qf * pf, axis=-1, keepdims=True)              # (TM, 1)

    # Hoisted, loop-invariant index patterns (never rebuilt in the hot loop).
    local_row = lax.broadcasted_iota(jnp.int32, (tm, tn), 0)
    local_col = lax.broadcasted_iota(jnp.int32, (tm, tn), 1)
    diag_local = local_row == local_col                     # identity (tm == tn)
    row_ids = i * tm + lax.broadcasted_iota(jnp.int32, (tm, 1), 0)

    def scaled_sim(k_tile):
        # bf16 x bf16 -> f32 on the MXU, contracting the LAST dims of both operands
        # (standard "NT" matmul form, same as flash-attention's qk^T; no materialized
        # key transpose through the XLU).
        s = lax.dot_general(q, k_tile,
                            dimension_numbers=(((1,), (1,)), ((), ())),
                            preferred_element_type=jnp.float32)         # (TM, TN)
        return s * inv_t                                    # 1/temperature in f32

    def online_update(m_prev, l_prev, s):
        # Flash-style online logsumexp over column tiles.
        m_new = jnp.maximum(m_prev, jnp.max(s, axis=-1, keepdims=True))
        l_new = (l_prev * jnp.exp(m_prev - m_new)
                 + jnp.sum(jnp.exp(s - m_new), axis=-1, keepdims=True))
        return m_new, l_new

    # ---- Special column tile j == i: the only tile containing diagonal entries.
    s_d = scaled_sim(q)                                     # keys == this tile's rows
    masked_d = diag_local
    if pad_cols:
        # Pad columns can only coincide with this tile when i is the last tile; the
        # check runs once per row tile, not per column tile, so it stays off the hot path.
        masked_d = masked_d | ((i * tn + local_col) >= n_valid)
    s_d = jnp.where(masked_d, mask_val, s_d)
    m0 = jnp.full((tm, 1), mask_val, dtype=jnp.float32)
    l0 = jnp.zeros((tm, 1), dtype=jnp.float32)
    m0, l0 = online_update(m0, l0, s_d)

    # ---- Regular column tiles: all j != i, with NO per-element diagonal masking.
    if pad_cols:
        pad_local = local_col >= (tn - pad_cols)            # static last-tile pad mask

    def col_step(jj, carry):
        m_prev, l_prev = carry
        j = jj + (jj >= i).astype(jj.dtype)                 # index remap skips tile i
        col_start = pl.multiple_of(j * tn, c_align)
        k_tile = z_ref[pl.ds(col_start, tn), :]             # (TN, D) bf16 keys
        s = scaled_sim(k_tile)
        if pad_cols:
            s = jnp.where(pad_local & (j == num_col_tiles - 1), mask_val, s)
        return online_update(m_prev, l_prev, s)

    if num_col_tiles > 1:
        m_f, l_f = lax.fori_loop(0, num_col_tiles - 1, col_step, (m0, l0), unroll=2)
    else:
        m_f, l_f = m0, l0

    lse = m_f + jnp.log(l_f)
    per_row = jnp.where(row_ids < n_valid, lse - pos, 0.0)  # drop pad rows
    out_ref[...] = jnp.sum(per_row, axis=0, keepdims=True)  # (1, 1) partial sum


def _keys_spec(np_rows, dp):
    # Single-buffer the VMEM-resident keys: their block index is constant, so the
    # default double-buffering would only double the dominant VMEM consumer.
    try:
        return pl.BlockSpec((np_rows, dp), lambda i: (0, 0),
                            pipeline_mode=pl.Buffered(1))
    except Exception:  # older jax without pipeline_mode / Buffered
        return pl.BlockSpec((np_rows, dp), lambda i: (0, 0))


def nt_xent_loss(z_i, z_j, temperature, *, eps=1e-8):
    """Pallas NT-Xent loss.  z_i, z_j: (B, ...) features; returns scalar f32."""
    b = z_i.shape[0]
    zi = z_i.reshape(b, -1).astype(jnp.float32)
    zj = z_j.reshape(b, -1).astype(jnp.float32)
    d = zi.shape[1]
    n = 2 * b

    # Pre-normalize ONCE in f32 (O(N*D)); store bf16 MXU operands.
    # Note: torch CosineSimilarity clamps max(||a||*||b||, eps); this clamps each norm,
    # which only differs for degenerate (near-zero) feature vectors.
    def _normalize(x):
        norm = jnp.sqrt(jnp.sum(x * x, axis=-1, keepdims=True))
        return x / jnp.maximum(norm, jnp.float32(eps))

    zi_hat = _normalize(zi)
    zj_hat = _normalize(zj)
    z_hat = jnp.concatenate([zi_hat, zj_hat], axis=0).astype(jnp.bfloat16)   # row r
    zp_hat = jnp.concatenate([zj_hat, zi_hat], axis=0).astype(jnp.bfloat16)  # row (r+B) mod N

    # Pad D to a lane multiple (128) so every matmul vreg is fully packed.
    dp = max(((d + 127) // 128) * 128, 128)
    if dp != d:
        z_hat = jnp.pad(z_hat, ((0, 0), (0, dp - d)))
        zp_hat = jnp.pad(zp_hat, ((0, 0), (0, dp - d)))

    # Row/column tile size: 256 amortizes grid-step overhead and fills the MXU on
    # v5e/v6e; 128 when it buys a second row tile (feeds both v7x TensorCores).
    if n >= 512:
        tile = 256
    elif n >= 256:
        tile = 128
    else:
        tile = max(16, ((n + 15) // 16) * 16)   # tiny batch: one bf16-aligned tile
    np_rows = ((n + tile - 1) // tile) * tile
    pad_rows = np_rows - n
    if pad_rows:
        z_hat = jnp.pad(z_hat, ((0, pad_rows), (0, 0)))
        zp_hat = jnp.pad(zp_hat, ((0, pad_rows), (0, 0)))

    tm = tn = tile
    num_row_tiles = np_rows // tm
    num_col_tiles = np_rows // tn

    kernel = functools.partial(
        _nt_xent_kernel, n_valid=n, tm=tm, tn=tn, num_col_tiles=num_col_tiles,
        pad_cols=pad_rows, inv_temp=1.0 / float(temperature))

    # VMEM budget: single-buffered resident bf16 keys + double-buffered partner tiles
    # + f32 working tiles.  Always pass an explicit limit (v5e's default scoped limit
    # is only 16 MiB); cap by the actual chip capacity when it is queryable.
    approx_vmem = (np_rows * dp * 2                 # resident bf16 keys (1 buffer)
                   + 2 * 2 * tm * dp * 2            # partner tiles, double-buffered
                   + 8 * tm * tn * 4                # f32 s/exp working tiles
                   + 2 * tm * dp * 4)               # f32 casts for the positive term
    try:
        vmem_cap = pltpu.get_tpu_info().vmem_capacity_bytes
    except Exception:
        vmem_cap = 64 * 1024 * 1024                 # conservative (v7x per-TC)
    cap_limit = max(32 << 20, int(vmem_cap * 0.9))
    vmem_limit = int(min(max(approx_vmem + (8 << 20), 32 << 20), cap_limit))

    # TODO(synk): add a streaming 2-D-grid fallback (keys tiled over an 'arbitrary'
    # column axis with VMEM-scratch m/l state) for N*D too large to keep the bf16
    # keys VMEM-resident (mainly relevant on v7x's 64 MiB/TC).

    partial = pl.pallas_call(
        kernel,
        out_shape=jax.ShapeDtypeStruct((num_row_tiles, 1), jnp.float32),
        grid=(num_row_tiles,),
        in_specs=[
            _keys_spec(np_rows, dp),                         # resident keys, fetched once
            pl.BlockSpec((tm, dp), lambda i: (i, 0)),        # positive-partner rows
        ],
        out_specs=pl.BlockSpec((1, 1), lambda i: (i, 0)),
        compiler_params=pltpu.CompilerParams(
            dimension_semantics=("parallel",),
            vmem_limit_bytes=vmem_limit),
        cost_estimate=pl.CostEstimate(
            flops=int(2 * np_rows * np_rows * dp + 2 * np_rows * dp),
            transcendentals=int(np_rows * np_rows),
            bytes_accessed=int(2 * np_rows * dp * 2 + num_row_tiles * 4)),
    )(z_hat, zp_hat)

    # Tiny final reduction (one value per row tile) + division by N, done in JAX so the
    # parallel row-tile axis never races on a shared scalar.
    return jnp.sum(partial) / jnp.float32(n)


def nt_xent_reference(z_i, z_j, temperature):
    """Pure-JAX f32 reference mirroring the PyTorch module."""
    b = z_i.shape[0]
    zi = z_i.reshape(b, -1).astype(jnp.float32)
    zj = z_j.reshape(b, -1).astype(jnp.float32)
    z = jnp.concatenate([zi, zj], axis=0)
    n = 2 * b
    dots = z @ z.T
    norms = jnp.linalg.norm(z, axis=-1, keepdims=True)
    sim = dots / jnp.maximum(norms * norms.T, 1e-8) / temperature
    row = jnp.arange(n)
    pos = sim[row, (row + b) % n]
    sim_no_diag = jnp.where(jnp.eye(n, dtype=bool), -jnp.inf, sim)
    lse = jax.scipy.special.logsumexp(sim_no_diag, axis=1)
    return jnp.sum(lse - pos) / n


if __name__ == "__main__":
    key = jax.random.PRNGKey(0)
    k1, k2, k3, k4 = jax.random.split(key, 4)
    temperature = 0.5

    # Small config matching the module's forward (flatten from dim 1): B=4, D=4*8*8=256.
    z_i = jax.random.normal(k1, (4, 4, 8, 8), dtype=jnp.float32)
    z_j = jax.random.normal(k2, (4, 4, 8, 8), dtype=jnp.float32)
    loss = nt_xent_loss(z_i, z_j, temperature)
    jax.block_until_ready(loss)
    ref = nt_xent_reference(z_i, z_j, temperature)
    # bf16 similarities -> tolerance relaxed vs. the old pure-f32 kernel.
    assert jnp.allclose(loss, ref, rtol=1e-2, atol=1e-2), (loss, ref)

    # Second check exercises the multi-tile path: diagonal-tile skip remap, pad rows /
    # pad columns, ragged feature dim padding, and the unrolled column loop.
    z_i2 = jax.random.normal(k3, (150, 200), dtype=jnp.float32)
    z_j2 = jax.random.normal(k4, (150, 200), dtype=jnp.float32)
    loss2 = nt_xent_loss(z_i2, z_j2, temperature)
    jax.block_until_ready(loss2)
    ref2 = nt_xent_reference(z_i2, z_j2, temperature)
    assert jnp.allclose(loss2, ref2, rtol=1e-2, atol=1e-2), (loss2, ref2)

    print("KERNEL_OK")
</pallas_src>

<mosaic_0001>
module attributes {stable_mosaic.version = 11 : i64} {
  func.func @_nt_xent_kernel(%arg0: i32, %arg1: memref<16x256xbf16, #tpu.memory_space<vmem>>, %arg2: memref<16x256xbf16, #tpu.memory_space<vmem>>, %arg3: memref<1x1xf32, #tpu.memory_space<vmem>>) attributes {dimension_semantics = [#tpu.dimension_semantics<parallel>], iteration_bounds = array<i64: 1>, scalar_prefetch = 0 : i64, scratch_operands = 0 : i64, tpu.core_type = #tpu.core_type<tc>, window_params = [{pipeline_mode = #tpu.pipeline_mode<synchronous>, transform_indices = @transform_0, window_bounds = array<i64: 16, 256>}, {transform_indices = @transform_1, window_bounds = array<i64: 16, 256>}, {transform_indices = @transform_2, window_bounds = array<i64: 1, 1>}]} {
    %c16_i32 = arith.constant 16 : i32
    %0 = arith.muli %arg0, %c16_i32 : i32
    %1 = tpu.assume_multiple %0, 16 : i32
    %2 = arith.index_cast %1 : i32 to index
    %c0 = arith.constant 0 : index
    %3 = vector.load %arg1[%2, %c0] : memref<16x256xbf16, #tpu.memory_space<vmem>>, vector<16x256xbf16>
    %4 = arith.extf %3 : vector<16x256xbf16> to vector<16x256xf32>
    %c0_0 = arith.constant 0 : index
    %c0_1 = arith.constant 0 : index
    %5 = vector.load %arg2[%c0_0, %c0_1] : memref<16x256xbf16, #tpu.memory_space<vmem>>, vector<16x256xbf16>
    %6 = arith.extf %5 : vector<16x256xbf16> to vector<16x256xf32>
    %7 = arith.mulf %4, %6 : vector<16x256xf32>
    %cst = arith.constant dense<0.000000e+00> : vector<16xf32>
    %8 = vector.multi_reduction <add>, %7, %cst [1] : vector<16x256xf32> to vector<16xf32>
    %9 = vector.shape_cast %8 : vector<16xf32> to vector<16x1xf32>
    %cst_2 = arith.constant 2.000000e+00 : f32
    %10 = vector.broadcast %cst_2 : f32 to vector<16x1xf32>
    %11 = arith.mulf %10, %9 : vector<16x1xf32>
    %12 = tpu.iota {dimensions = array<i32: 0>} : vector<16x16xi32>
    %13 = tpu.iota {dimensions = array<i32: 1>} : vector<16x16xi32>
    %14 = arith.cmpi eq, %12, %13 : vector<16x16xi32>
    %c16_i32_3 = arith.constant 16 : i32
    %15 = arith.muli %arg0, %c16_i32_3 : i32
    %16 = tpu.iota {dimensions = array<i32: 0>} : vector<16x1xi32>
    %17 = vector.broadcast %15 : i32 to vector<16x1xi32>
    %18 = arith.addi %17, %16 : vector<16x1xi32>
    %cst_4 = arith.constant dense<0.000000e+00> : vector<16x16xf32>
    %19 = tpu.matmul %3, %3, %cst_4 {dimension_numbers = #tpu.dot_dimension_numbers<[1], [1], [0], [0], [0, 0, 1, 0], [], []>} : vector<16x256xbf16>, vector<16x256xbf16>, vector<16x16xf32> -> vector<16x16xf32>
    %cst_5 = arith.constant 2.000000e+00 : f32
    %20 = vector.broadcast %cst_5 : f32 to vector<16x16xf32>
    %21 = arith.mulf %19, %20 : vector<16x16xf32>
    %c16_i32_6 = arith.constant 16 : i32
    %22 = arith.muli %arg0, %c16_i32_6 : i32
    %23 = vector.broadcast %22 : i32 to vector<16x16xi32>
    %24 = arith.addi %23, %13 : vector<16x16xi32>
    %c8_i32 = arith.constant 8 : i32
    %25 = vector.broadcast %c8_i32 : i32 to vector<16x16xi32>
    %26 = arith.cmpi sge, %24, %25 : vector<16x16xi32>
    %27 = arith.ori %14, %26 : vector<16x16xi1>
    %cst_7 = arith.constant -1.000000e+30 : f32
    %28 = vector.broadcast %cst_7 : f32 to vector<16x16xf32>
    %29 = arith.select %27, %28, %21 : vector<16x16xi1>, vector<16x16xf32>
    %cst_8 = arith.constant -1.000000e+30 : f32
    %30 = vector.broadcast %cst_8 : f32 to vector<16x1xf32>
    %cst_9 = arith.constant 0.000000e+00 : f32
    %31 = vector.broadcast %cst_9 : f32 to vector<16x1xf32>
    %cst_10 = arith.constant dense<0xFF800000> : vector<16xf32>
    %32 = vector.multi_reduction <maximumf>, %29, %cst_10 [1] : vector<16x16xf32> to vector<16xf32>
    %33 = vector.shape_cast %32 : vector<16xf32> to vector<16x1xf32>
    %34 = arith.maximumf %30, %33 : vector<16x1xf32>
    %35 = arith.subf %30, %34 : vector<16x1xf32>
    %36 = math.exp %35 : vector<16x1xf32>
    %37 = arith.mulf %31, %36 : vector<16x1xf32>
    %38 = vector.broadcast %34 : vector<16x1xf32> to vector<16x16xf32>
    %39 = arith.subf %29, %38 : vector<16x16xf32>
    %40 = math.exp %39 : vector<16x16xf32>
    %cst_11 = arith.constant dense<0.000000e+00> : vector<16xf32>
    %41 = vector.multi_reduction <add>, %40, %cst_11 [1] : vector<16x16xf32> to vector<16xf32>
    %42 = vector.shape_cast %41 : vector<16xf32> to vector<16x1xf32>
    %43 = arith.addf %37, %42 : vector<16x1xf32>
    %44 = math.log %43 : vector<16x1xf32>
    %45 = arith.addf %34, %44 : vector<16x1xf32>
    %c8_i32_12 = arith.constant 8 : i32
    %46 = vector.broadcast %c8_i32_12 : i32 to vector<16x1xi32>
    %47 = arith.cmpi slt, %18, %46 : vector<16x1xi32>
    %48 = arith.subf %45, %11 : vector<16x1xf32>
    %cst_13 = arith.constant 0.000000e+00 : f32
    %49 = vector.broadcast %cst_13 : f32 to vector<16x1xf32>
    %50 = arith.select %47, %48, %49 : vector<16x1xi1>, vector<16x1xf32>
    %cst_14 = arith.constant dense<0.000000e+00> : vector<1xf32>
    %51 = vector.multi_reduction <add>, %50, %cst_14 [0] : vector<16x1xf32> to vector<1xf32>
    %52 = vector.shape_cast %51 : vector<1xf32> to vector<1x1xf32>
    %c0_15 = arith.constant 0 : index
    %c0_16 = arith.constant 0 : index
    %53 = vector.load %arg3[%c0_15, %c0_16] : memref<1x1xf32, #tpu.memory_space<vmem>>, vector<1x1xf32>
    tpu.vector_store %arg3[%c0_15, %c0_16], %52 {strides = array<i32>} : memref<1x1xf32, #tpu.memory_space<vmem>>, vector<1x1xf32>,
    return
  }
  func.func @transform_0(%arg0: i32) -> (i32, i32) {
    %c0_i32 = arith.constant 0 : i32
    %c0_i32_0 = arith.constant 0 : i32
    %c0_i32_1 = arith.constant 0 : i32
    return %c0_i32, %c0_i32_0 : i32, i32
  }
  func.func @transform_1(%arg0: i32) -> (i32, i32) {
    %c0_i32 = arith.constant 0 : i32
    %c0_i32_0 = arith.constant 0 : i32
    return %arg0, %c0_i32 : i32, i32
  }
  func.func @transform_2(%arg0: i32) -> (i32, i32) {
    %c0_i32 = arith.constant 0 : i32
    %c0_i32_0 = arith.constant 0 : i32
    return %arg0, %c0_i32 : i32, i32
  }
}

</mosaic_0001>

<llo_original>
// kernel: tpu_custom_call.1
$region0: #{tpu_custom_call.1}
  #allocation0 [shape = 'u32[]', space=smem, size = 0x4, offset = 0x4, fixed_abs, tag = 'smem constant byte address 0x4 - core index']
  #allocation1 [shape = 'u32[144,128]{1,0:T(1,128)}', space=vmem, size = 0x12000, scoped, tag = 'internal scratch']
  %s0 = inlined_call_operand.hbm [shape: bf16[16,256], index: 0, kind: input, shape index: {}]
  %s1 = inlined_call_operand.hbm [shape: bf16[16,256], index: 1, kind: input, shape index: {}]
  %s2 = inlined_call_operand.hbm [shape: f32[1,1], index: 2, kind: output, shape index: {}]
  %s3 = sld [smem:[#allocation0]]
  $region26: #{tpu_custom_call.1} parent=0
    _
  %s5 = ssub.s32 1, %s3
  %s6 = scalar_select 0, %s5, %s3
  $region1: #{tpu_custom_call.1} parent=0
    #allocation2 [shape = 'u8[8192]{0}', space=vmem, size = 0x2000, scoped, tag = 'input window, operand 0, single buffered']
    #allocation3 [shape = 's32[1]{0}', space=sflag, size = 0x4, scoped, tag = 'scoped memory for tpu_custom_call.1']
    #allocation4 [shape = 's32[1]{0}', space=sflag, size = 0x4, scoped, tag = 'scoped memory for tpu_custom_call.1']
    #allocation5 [shape = 'u8[8192]{0}', space=vmem, size = 0x2000, scoped, tag = 'input window, operand 1, single buffered']
    #allocation6 [shape = 's32[1]{0}', space=sflag, size = 0x4, scoped, tag = 'scoped memory for tpu_custom_call.1']
    #allocation7 [shape = 'u8[512]{0}', space=vmem, size = 0x400, scoped, tag = 'output window, operand 0, single buffered']
    %7 = vsyncpa [#allocation3], 0
    %8 = vsyncpa [#allocation6], 0
    %9 = vsyncpa [#allocation4], 0
    // Predicated region
    $region2: #{tpu_custom_call.1} parent=1 // pred_check
      _
    $region3: #{tpu_custom_call.1} parent=1 // pred_check_branch
      %11 = sbr.rel (0) target = $region5
    $region4: #{tpu_custom_call.1} parent=1 // pred_region
      %s13 = ssub.s32 256, 256
      %14 = vsyncadd [#allocation3], %s13
      %s15 = sshll.u32 [#allocation2], 4
      %s16 = int_to_ptr.vmem [resolvable:$true] %s15
      %21 = dma.hbm_to_vmem [thread:$0]  %s0, 256, %s16, [#allocation3], 128, 128, 8
    $region5: #{tpu_custom_call.1} parent=1 // pred_fallthru
      _
    // Predicated region
    $region6: #{tpu_custom_call.1} parent=1 // pred_check
      _
    $region7: #{tpu_custom_call.1} parent=1 // pred_check_branch
      %23 = sbr.rel (0) target = $region9
    $region8: #{tpu_custom_call.1} parent=1 // pred_region
      %s25 = ssub.s32 256, 256
      %26 = vsyncadd [#allocation6], %s25
      %s27 = sshll.u32 [#allocation5], 4
      %s28 = int_to_ptr.vmem [resolvable:$true] %s27
      %33 = dma.hbm_to_vmem [thread:$0]  %s1, 256, %s28, [#allocation6], 128, 128, 8
    $region9: #{tpu_custom_call.1} parent=1 // pred_fallthru
      _
    // Predicated region
    $region10: #{tpu_custom_call.1} parent=1 // pred_check
      _
    $region11: #{tpu_custom_call.1} parent=1 // pred_check_branch
      %35 = sbr.rel (0) target = $region13
    $region12: #{tpu_custom_call.1} parent=1 // pred_region
      %36 = dma.done [#allocation3], 256
    $region13: #{tpu_custom_call.1} parent=1 // pred_fallthru
      _
    // Predicated region
    $region14: #{tpu_custom_call.1} parent=1 // pred_check
      _
    $region15: #{tpu_custom_call.1} parent=1 // pred_check_branch
      %38 = sbr.rel (0) target = $region17
    $region16: #{tpu_custom_call.1} parent=1 // pred_region
      %39 = dma.done [#allocation6], 256
    $region17: #{tpu_custom_call.1} parent=1 // pred_fallthru
      _
    %s41 = smul.u32 0, 16
    %s42 = sshra.s32 %s41, 3
    %s43 = sand.u32 %s41, 7
    %s44 = smul.u32 %s42, 2
    %s45 = smul.addr %s44, 4
    %s46 = scalar_lea.vmem [#allocation2], %s45
    %v47 = vld [vmem:[%s46] sm:$0xff]
    %v48 = vld [vmem:[%s46 + $0x8] sm:$0xff]
    %v49 = vunpack.c.l.bf16 %v47
    %v50 = vunpack.c.h.bf16 %v47
    %v51 = vunpack.c.l.bf16 %v48
    %v52 = vunpack.c.h.bf16 %v48
    %v53 = vld [vmem:[#allocation5] sm:$0xff]
    %v54 = vld [vmem:[#allocation5 + $0x8] sm:$0xff]
    %v55 = vunpack.c.l.bf16 %v53
    %v56 = vunpack.c.h.bf16 %v53
    %v57 = vunpack.c.l.bf16 %v54
    %v58 = vunpack.c.h.bf16 %v54
    %v59 = vmul.f32 %v49, %v55
    %v60 = vmul.f32 %v50, %v56
    %v61 = vmul.f32 %v51, %v57
    %v62 = vmul.f32 %v52, %v58
    %v63 = vadd.f32 %v59, %v60
    %64 = vadd.xlane.f32.xlu0 %v63
    %v65 = vpop.xlane.xlu0 %64
    %v66 = vadd.f32 %v61, %v62
    %67 = vadd.xlane.f32.xlu0 %v66
    %v68 = vpop.xlane.xlu0 %67
    %v69 = vmul.f32 %v65, 2.0
    %v70 = vmul.f32 %v68, 2.0
    %v71 = vlaneseq
    %v72 = vshrl.u32 %v71, 7
    %v73 = vadd.s32 %v72, 8
    %v74 = vlaneseq
    %v75 = vand.u32 %v74, 127
    %vm76 = vcmp.eq.s32.totalorder %v72, %v75
    %vm77 = vcmp.eq.s32.totalorder %v73, %v75
    %v78 = vstv %s41
    %v79 = vadd.s32 %v78, %v72
    %v80 = vadd.s32 %v78, %v73
    %v83 = vunpack.c.l.b16 %v47
    %v84 = vunpack.c.h.b16 %v47
    %v85 = vunpack.c.l.b16 %v48
    %v86 = vunpack.c.h.b16 %v48
    %v87 = vpack.c.b16 %v85, %v83
    %v88 = vpack.c.b16 %v86, %v84
    %91 = vmatprep.subr.bf16.mxu0 %v88
    %92 = vmatpush1.bf16.xpose.msra.mxu0 %v87
    %93 = vmatprep.subr.bf16.mxu0 0
    %94 = vmatpush1.bf16.xpose.msra.mxu0 0
    %95 = vmatprep.subr.bf16.mxu0 0
    %96 = vmatpush1.bf16.xpose.msra.mxu0 0
    %97 = vmatprep.subr.bf16.mxu0 0
    %98 = vmatpush1.bf16.xpose.msra.mxu0 0
    %99 = vmatprep.subr.bf16.mxu0 0
    %100 = vmatpush1.bf16.xpose.msra.mxu0 0
    %101 = vmatprep.subr.bf16.mxu0 0
    %102 = vmatpush1.bf16.xpose.msra.mxu0 0
    %103 = vmatprep.subr.bf16.mxu0 0
    %104 = vmatpush1.bf16.xpose.msra.mxu0 0
    %105 = vmatprep.subr.bf16.mxu0 0
    %106 = vmatpush1.bf16.xpose.msra.mxu0 0
    %107 = vmatprep.subr.bf16.mxu0 0
    %108 = vmatpush1.bf16.xpose.msra.mxu0 0
    %109 = vmatprep.subr.bf16.mxu0 0
    %110 = vmatpush1.bf16.xpose.msra.mxu0 0
    %111 = vmatprep.subr.bf16.mxu0 0
    %112 = vmatpush1.bf16.xpose.msra.mxu0 0
    %113 = vmatprep.subr.bf16.mxu0 0
    %114 = vmatpush1.bf16.xpose.msra.mxu0 0
    %115 = vmatprep.subr.bf16.mxu0 0
    %116 = vmatpush1.bf16.xpose.msra.mxu0 0
    %117 = vmatprep.subr.bf16.mxu0 0
    %118 = vmatpush1.bf16.xpose.msra.mxu0 0
    %119 = vmatprep.subr.bf16.mxu0 0
    %120 = vmatpush1.bf16.xpose.msra.mxu0 0
    %121 = vmatprep.subr.bf16.mxu0 0
    %122 = vmatpush1.bf16.xpose.msra.mxu0 0
    %123 = vmatprep.mubr.bf16.mxu0 %v88
    %124 = vmatmul.mubr.bf16.gmra.mrb[0].mxu0 %v87
    %v125 = vpop.f32.mrb[0].mxu0
    %v126 = vadd.f32 0.0, %v125
    %v127 = vpop.f32.mrb[0].mxu0
    %v128 = vpop.f32.mrb[0].mxu0
    %v129 = vadd.f32 0.0, %v128
    %v130 = vpop.f32.mrb[0].mxu0
    %131 = vdwg.mxu0
    %v132 = vmul.f32 %v126, 2.0
    %v133 = vmul.f32 %v129, 2.0
    %v134 = vadd.s32 %v78, %v75
    %vm135 = vcmp.ge.s32.totalorder %v134, 8
    %vm136 = vmor %vm76, %vm135
    %vm137 = vmor %vm77, %vm135
    %v138 = vsel %vm136, -1e+30, %v132
    %v139 = vsel %vm137, -1e+30, %v133
    %vm140 = vcmask 130048
    %v141 = vsel %vm140, %v138, -inf
    %142 = vmax.xlane.f32.xlu0 %v141
    %v143 = vpop.xlane.xlu0 %142
    %v144 = vsel %vm140, %v139, -inf
    %145 = vmax.xlane.f32.xlu0 %v144
    %v146 = vpop.xlane.xlu0 %145
    %v147 = vmax.f32 %v143, -1e+30
    %v148 = vmax.f32 %v146, -1e+30
    %v149 = vsub.f32 -1e+30, %v147
    %v150 = vsub.f32 -1e+30, %v148
    %v151 = vmul.f32 %v149, 1.442695
    %v152 = vpow.pop %v151
    %v153 = vmul.f32 %v150, 1.442695
    %v154 = vpow.pop %v153
    %v155 = vmul.f32 %v152, 0.0
    %v156 = vmul.f32 %v154, 0.0
    %v157 = vsub.f32 %v138, %v147
    %v158 = vsub.f32 %v139, %v148
    %v159 = vmul.f32 %v157, 1.442695
    %v160 = vpow.pop %v159
    %v161 = vmul.f32 %v158, 1.442695
    %v162 = vpow.pop %v161
    %v163 = vsel %vm140, %v160, 0.0
    %164 = vadd.xlane.f32.xlu0 %v163
    %v165 = vpop.xlane.xlu0 %164
    %v166 = vsel %vm140, %v162, 0.0
    %167 = vadd.xlane.f32.xlu0 %v166
    %v168 = vpop.xlane.xlu0 %167
    %v169 = vadd.f32 %v155, %v165
    %v170 = vadd.f32 %v156, %v168
    %v171 = vlog2.pop %v169
    %v172 = vmul.f32 %v171, 0.6931472
    %v173 = vlog2.pop %v170
    %v174 = vmul.f32 %v173, 0.6931472
    %v175 = vadd.f32 %v147, %v172
    %v176 = vadd.f32 %v148, %v174
    %vm177 = vcmp.lt.s32.totalorder %v79, 8
    %vm178 = vcmp.lt.s32.totalorder %v80, 8
    %v179 = vsub.f32 %v175, %v69
    %v180 = vsub.f32 %v176, %v70
    %v181 = vsel %vm177, %v179, 0.0
    %v182 = vsel %vm178, %v180, 0.0
    %v183 = vadd.f32 %v181, %v182
    %v184 = vrot.slane %v183, 4
    %v185 = vadd.f32 %v183, %v184
    %v186 = vrot.slane %v185, 2
    %v187 = vadd.f32 %v185, %v186
    %v188 = vrot.slane %v187, 1
    %v189 = vadd.f32 %v187, %v188
    %vm190 = vcmask 0
    %191 = vst.msk [vmem:[#allocation7] sm:$0x1] %vm190, %v189
    // Predicated region
    $region18: #{tpu_custom_call.1} parent=1 // pred_check
      _
    $region19: #{tpu_custom_call.1} parent=1 // pred_check_branch
      %193 = sbr.rel (0) target = $region21
    $region20: #{tpu_custom_call.1} parent=1 // pred_region
      %s195 = ssub.s32 16, 16
      %196 = vsyncadd [#allocation4], %s195
      %s198 = sshll.u32 [#allocation7], 4
      %s199 = int_to_ptr.vmem [resolvable:$true] %s198
      %201 = dma.vmem_to_hbm [thread:$0]  %s199, 16, %s2, [#allocation4]
    $region21: #{tpu_custom_call.1} parent=1 // pred_fallthru
      _
    // Predicated region
    $region22: #{tpu_custom_call.1} parent=1 // pred_check
      _
    $region23: #{tpu_custom_call.1} parent=1 // pred_check_branch
      %203 = sbr.rel (0) target = $region25
    $region24: #{tpu_custom_call.1} parent=1 // pred_region
      %204 = dma.done [#allocation4], 16
    $region25: #{tpu_custom_call.1} parent=1 // pred_fallthru
      _
    %205 = vsyncpa [#allocation3], 1
    %206 = vsyncpa [#allocation6], 1
    %207 = vsyncpa [#allocation4], 1

</llo_original>
